<compile_context>
chip_gen: v7x
topology: tpu7x:2x2x1
jax: 0.10.0
libtpu: 0.0.40
codegen_flags: <defaults>
</compile_context>

<pallas_src>
import jax
import jax.numpy as jnp
from jax import lax
from jax.experimental import pallas as pl
from jax.experimental.pallas import tpu as pltpu


# ---------------------------------------------------------------------------
# Kernels
# ---------------------------------------------------------------------------

def _nconv_group_kernel(adj_ref, x_ref, o_ref):
    """adj_ref: (N, N); x_ref / o_ref: (gb, N, tt).  out[g] = adj @ x[g]."""
    gb = x_ref.shape[0]

    def body(g, carry):
        # Read adj from VMEM inside the loop body: avoids pinning ~N*N/1024
        # vregs live across the whole (possibly unrolled) loop (spill risk).
        o_ref[g] = jnp.dot(
            adj_ref[...], x_ref[g], preferred_element_type=jnp.float32
        ).astype(o_ref.dtype)
        return carry

    lax.fori_loop(0, gb, body, 0, unroll=(gb <= 8))


def _nconv_wide_kernel(adj_ref, x_ref, o_ref):
    """adj_ref: (N, N); x_ref / o_ref: (N, tc).  One wide MXU matmul."""
    o_ref[...] = jnp.dot(
        adj_ref[...], x_ref[...], preferred_element_type=jnp.float32
    ).astype(o_ref.dtype)


# ---------------------------------------------------------------------------
# Tile-size heuristics (HBM-bound op: make blocks as big as VMEM allows,
# lane-dense, few grid steps).
# ---------------------------------------------------------------------------

def _vmem_budgets(N, itemsize):
    """Generation-aware budgets: per-x-block budget and the scoped-VMEM cap."""
    try:
        phys = int(pltpu.get_tpu_info().vmem_capacity_bytes)
    except Exception:
        phys = 64 * 1024 * 1024  # conservative: v7x has 64 MiB per TensorCore
    cap = (phys * 3) // 4        # leave headroom for compiler scratch
    adj_bytes = N * N * itemsize
    # Double-buffered x + double-buffered out ~= 4 * block, plus adj buffers.
    x_block_budget = max(1 << 20, (cap - 2 * adj_bytes - (2 << 20)) // 4)
    return x_block_budget, cap, adj_bytes


def _pick_time_tile(T, N, itemsize, budget):
    """Prefer tt = T (fully contiguous DMA); else the largest multiple-of-128
    divisor of T that fits the budget; else the largest divisor that fits."""
    max_tt = max(1, budget // (N * itemsize))
    if T <= max_tt:
        return T
    best = 0
    for tt in range(128, min(T, max_tt) + 1, 128):
        if T % tt == 0:
            best = tt
    if best:
        return best
    best = 1
    d = 1
    while d * d <= T:
        if T % d == 0:
            for c in (d, T // d):
                if c <= max_tt and c > best:
                    best = c
        d += 1
    return best


def _pick_group_tile(G, N, tt, itemsize, budget, max_gb=64):
    """Largest divisor of G (capped) whose (gb, N, tt) block fits the budget."""
    per = N * tt * itemsize
    best = 1
    for gb in range(1, min(G, max_gb) + 1):
        if G % gb == 0 and gb * per <= budget:
            best = gb
    return best


def _pick_wide_tile(W, N, itemsize, budget):
    """Column tile (multiple of 128) and padded width for the (N, W) layout."""
    max_cols = budget // (N * itemsize)
    max_cols = max(128, (max_cols // 128) * 128)
    w_pad128 = -(-W // 128) * 128
    if w_pad128 <= max_cols:
        return w_pad128, w_pad128
    tc = max_cols
    return tc, -(-W // tc) * tc


# ---------------------------------------------------------------------------
# Wrapper
# ---------------------------------------------------------------------------

def nconv(x, adj):
    """NConv forward:  out[b, c, v, l] = sum_w adj[v, w] * x[b, c, w, l].

    x   : (B, C, N, T)
    adj : (N, N)
    returns (B, C, N, T), same dtype as x.

    The kernel is HBM-bandwidth-bound; if precision allows, casting x / adj
    to bfloat16 before calling roughly halves wall time.
    """
    B, C, N, T = x.shape
    assert adj.shape == (N, N), "adj must be (N, N) matching x's node axis"
    adj = adj.astype(x.dtype)

    itemsize = jnp.dtype(x.dtype).itemsize
    G = B * C
    x_block_budget, cap, adj_bytes = _vmem_budgets(N, itemsize)

    cost = pl.CostEstimate(
        flops=2 * G * N * N * T,
        transcendentals=0,
        bytes_accessed=(2 * G * N * T + N * N) * itemsize,
    )

    if T >= 128:
        # ---- Batched path: stream (gb, N, tt) blocks; no wrapper transpose,
        # single HBM pass for x and out, adj resident in VMEM.
        x3 = x.reshape(G, N, T)  # free reshape
        tt = _pick_time_tile(T, N, itemsize, x_block_budget)
        gb = _pick_group_tile(G, N, tt, itemsize, x_block_budget)
        if T // tt == 1 and gb == G and G > 1:
            # keep >= 2 grid steps so v7x's two TensorCores both get work
            gb = max(d for d in range(1, G) if G % d == 0)

        blk = gb * N * tt * itemsize
        vmem_limit = int(min(cap, max(4 * blk + 2 * adj_bytes + (2 << 20),
                                      32 << 20)))

        out3 = pl.pallas_call(
            _nconv_group_kernel,
            out_shape=jax.ShapeDtypeStruct((G, N, T), x.dtype),
            grid_spec=pltpu.PrefetchScalarGridSpec(
                num_scalar_prefetch=0,
                grid=(G // gb, T // tt),
                in_specs=[
                    pl.BlockSpec((N, N), lambda g, t: (0, 0)),         # adj
                    pl.BlockSpec((gb, N, tt), lambda g, t: (g, 0, t)),  # x
                ],
                out_specs=pl.BlockSpec((gb, N, tt), lambda g, t: (g, 0, t)),
            ),
            compiler_params=pltpu.CompilerParams(
                dimension_semantics=("parallel", "parallel"),
                vmem_limit_bytes=vmem_limit),
            cost_estimate=cost,
        )(adj, x3)
        return out3.reshape(B, C, N, T)

    # ---- Small-T path (T < 128): a (.., N, T) block layout would hit the
    # masked-store / lane-sparsity cliff.  Repack to one lane-dense (N, G*T)
    # matrix in the wrapper (single XLA transpose pass), then each grid step
    # is one wide adj @ X matmul with full-lane stores.
    # TODO(synk): for 32 < T < 128 an in-kernel XLU repack would avoid the
    # wrapper transpose pass; using the wrapper repack here for robustness.
    W = G * T
    xw = x.reshape(G, N, T).transpose(1, 0, 2).reshape(N, W)
    tc, w_pad = _pick_wide_tile(W, N, itemsize, x_block_budget)
    if w_pad != W:
        xw = jnp.pad(xw, ((0, 0), (0, w_pad - W)))

    blk = N * tc * itemsize
    vmem_limit = int(min(cap, max(4 * blk + 2 * adj_bytes + (2 << 20),
                                  32 << 20)))

    outw = pl.pallas_call(
        _nconv_wide_kernel,
        out_shape=jax.ShapeDtypeStruct((N, w_pad), x.dtype),
        grid_spec=pltpu.PrefetchScalarGridSpec(
            num_scalar_prefetch=0,
            grid=(w_pad // tc,),
            in_specs=[
                pl.BlockSpec((N, N), lambda j: (0, 0)),   # adj resident
                pl.BlockSpec((N, tc), lambda j: (0, j)),  # x columns
            ],
            out_specs=pl.BlockSpec((N, tc), lambda j: (0, j)),
        ),
        compiler_params=pltpu.CompilerParams(
            dimension_semantics=("parallel",),
            vmem_limit_bytes=vmem_limit),
        cost_estimate=cost,
    )(adj, xw)

    out = outw[:, :W].reshape(N, G, T).transpose(1, 0, 2)
    # torch .contiguous() has no JAX equivalent / is a layout no-op here.
    return out.reshape(B, C, N, T)


if __name__ == "__main__":
    key = jax.random.PRNGKey(0)
    kx, ka, kx2, ka2 = jax.random.split(key, 4)

    # Primary small shape (exercises the small-T lane-repack path).
    B, C, N, T = 2, 4, 16, 16
    x = jax.random.normal(kx, (B, C, N, T), dtype=jnp.float32)
    adj = jax.random.normal(ka, (N, N), dtype=jnp.float32) * 0.1

    out = jax.block_until_ready(nconv(x, adj))
    ref = jnp.einsum("bcwl,vw->bcvl", x, adj,
                     precision=jax.lax.Precision.HIGHEST)
    assert out.shape == (B, C, N, T)
    assert jnp.allclose(out, ref, atol=1e-4, rtol=1e-4)

    # Also exercise the T >= 128 batched path (still tiny).
    B2, C2, N2, T2 = 1, 2, 8, 256
    x2 = jax.random.normal(kx2, (B2, C2, N2, T2), dtype=jnp.float32)
    adj2 = jax.random.normal(ka2, (N2, N2), dtype=jnp.float32) * 0.1
    out2 = jax.block_until_ready(nconv(x2, adj2))
    ref2 = jnp.einsum("bcwl,vw->bcvl", x2, adj2,
                      precision=jax.lax.Precision.HIGHEST)
    assert out2.shape == (B2, C2, N2, T2)
    assert jnp.allclose(out2, ref2, atol=1e-4, rtol=1e-4)

    print("KERNEL_OK")
</pallas_src>

<mosaic_0001>
module attributes {stable_mosaic.version = 11 : i64} {
  func.func @_nconv_wide_kernel(%arg0: i32, %arg1: memref<16x16xf32, #tpu.memory_space<vmem>>, %arg2: memref<16x128xf32, #tpu.memory_space<vmem>>, %arg3: memref<16x128xf32, #tpu.memory_space<vmem>>) attributes {dimension_semantics = [#tpu.dimension_semantics<parallel>], iteration_bounds = array<i64: 1>, scalar_prefetch = 0 : i64, scratch_operands = 0 : i64, tpu.core_type = #tpu.core_type<tc>, window_params = [{pipeline_mode = #tpu.pipeline_mode<synchronous>, transform_indices = @transform_0, window_bounds = array<i64: 16, 16>}, {transform_indices = @transform_1, window_bounds = array<i64: 16, 128>}, {transform_indices = @transform_2, window_bounds = array<i64: 16, 128>}]} {
    %c0 = arith.constant 0 : index
    %c0_0 = arith.constant 0 : index
    %0 = vector.load %arg1[%c0, %c0_0] : memref<16x16xf32, #tpu.memory_space<vmem>>, vector<16x16xf32>
    %c0_1 = arith.constant 0 : index
    %c0_2 = arith.constant 0 : index
    %1 = vector.load %arg2[%c0_1, %c0_2] : memref<16x128xf32, #tpu.memory_space<vmem>>, vector<16x128xf32>
    %cst = arith.constant dense<0.000000e+00> : vector<16x128xf32>
    %2 = tpu.matmul %0, %1, %cst {dimension_numbers = #tpu.dot_dimension_numbers<[1], [0], [0], [1], [0, 0, 1, 1], [], []>} : vector<16x16xf32>, vector<16x128xf32>, vector<16x128xf32> -> vector<16x128xf32>
    %c0_3 = arith.constant 0 : index
    %c0_4 = arith.constant 0 : index
    %3 = vector.load %arg3[%c0_3, %c0_4] : memref<16x128xf32, #tpu.memory_space<vmem>>, vector<16x128xf32>
    tpu.vector_store %arg3[%c0_3, %c0_4], %2 {strides = array<i32>} : memref<16x128xf32, #tpu.memory_space<vmem>>, vector<16x128xf32>,
    return
  }
  func.func @transform_0(%arg0: i32) -> (i32, i32) {
    %c0_i32 = arith.constant 0 : i32
    %c0_i32_0 = arith.constant 0 : i32
    %c0_i32_1 = arith.constant 0 : i32
    return %c0_i32, %c0_i32_0 : i32, i32
  }
  func.func @transform_1(%arg0: i32) -> (i32, i32) {
    %c0_i32 = arith.constant 0 : i32
    %c0_i32_0 = arith.constant 0 : i32
    return %c0_i32, %arg0 : i32, i32
  }
  func.func @transform_2(%arg0: i32) -> (i32, i32) {
    %c0_i32 = arith.constant 0 : i32
    %c0_i32_0 = arith.constant 0 : i32
    return %c0_i32, %arg0 : i32, i32
  }
}

</mosaic_0001>

<llo_original>
// kernel: tpu_custom_call.1
$region0: #{tpu_custom_call.1}
  #allocation0 [shape = 'u32[]', space=smem, size = 0x4, offset = 0x4, fixed_abs, tag = 'smem constant byte address 0x4 - core index']
  #allocation1 [shape = 'u32[144,128]{1,0:T(1,128)}', space=vmem, size = 0x12000, scoped, tag = 'internal scratch']
  %s0 = inlined_call_operand.hbm [shape: f32[16,16], index: 0, kind: input, shape index: {}]
  %s1 = inlined_call_operand.hbm [shape: f32[16,128], index: 1, kind: input, shape index: {}]
  %s2 = inlined_call_operand.hbm [shape: f32[16,128], index: 2, kind: output, shape index: {}]
  %s3 = sld [smem:[#allocation0]]
  $region26: #{tpu_custom_call.1} parent=0
    _
  %s5 = ssub.s32 1, %s3
  %s6 = scalar_select 0, %s5, %s3
  $region1: #{tpu_custom_call.1} parent=0
    #allocation2 [shape = 'u8[8192]{0}', space=vmem, size = 0x2000, scoped, tag = 'input window, operand 0, single buffered']
    #allocation3 [shape = 's32[1]{0}', space=sflag, size = 0x4, scoped, tag = 'scoped memory for tpu_custom_call.1']
    #allocation4 [shape = 's32[1]{0}', space=sflag, size = 0x4, scoped, tag = 'scoped memory for tpu_custom_call.1']
    #allocation5 [shape = 'u8[8192]{0}', space=vmem, size = 0x2000, scoped, tag = 'input window, operand 1, single buffered']
    #allocation6 [shape = 's32[1]{0}', space=sflag, size = 0x4, scoped, tag = 'scoped memory for tpu_custom_call.1']
    #allocation7 [shape = 'u8[8192]{0}', space=vmem, size = 0x2000, scoped, tag = 'output window, operand 0, single buffered']
    %7 = vsyncpa [#allocation3], 0
    %8 = vsyncpa [#allocation6], 0
    %9 = vsyncpa [#allocation4], 0
    // Predicated region
    $region2: #{tpu_custom_call.1} parent=1 // pred_check
      _
    $region3: #{tpu_custom_call.1} parent=1 // pred_check_branch
      %11 = sbr.rel (0) target = $region5
    $region4: #{tpu_custom_call.1} parent=1 // pred_region
      %s13 = ssub.s32 256, 256
      %14 = vsyncadd [#allocation3], %s13
      %s15 = sshll.u32 [#allocation2], 4
      %s16 = int_to_ptr.vmem [resolvable:$true] %s15
      %21 = dma.hbm_to_vmem [thread:$0]  %s0, 256, %s16, [#allocation3], 128, 128, 8
    $region5: #{tpu_custom_call.1} parent=1 // pred_fallthru
      _
    // Predicated region
    $region6: #{tpu_custom_call.1} parent=1 // pred_check
      _
    $region7: #{tpu_custom_call.1} parent=1 // pred_check_branch
      %23 = sbr.rel (0) target = $region9
    $region8: #{tpu_custom_call.1} parent=1 // pred_region
      %s25 = ssub.s32 256, 256
      %26 = vsyncadd [#allocation6], %s25
      %s27 = sshll.u32 [#allocation5], 4
      %s28 = int_to_ptr.vmem [resolvable:$true] %s27
      %33 = dma.hbm_to_vmem [thread:$0]  %s1, 256, %s28, [#allocation6], 128, 128, 8
    $region9: #{tpu_custom_call.1} parent=1 // pred_fallthru
      _
    // Predicated region
    $region10: #{tpu_custom_call.1} parent=1 // pred_check
      _
    $region11: #{tpu_custom_call.1} parent=1 // pred_check_branch
      %35 = sbr.rel (0) target = $region13
    $region12: #{tpu_custom_call.1} parent=1 // pred_region
      %36 = dma.done [#allocation3], 256
    $region13: #{tpu_custom_call.1} parent=1 // pred_fallthru
      _
    // Predicated region
    $region14: #{tpu_custom_call.1} parent=1 // pred_check
      _
    $region15: #{tpu_custom_call.1} parent=1 // pred_check_branch
      %38 = sbr.rel (0) target = $region17
    $region16: #{tpu_custom_call.1} parent=1 // pred_region
      %39 = dma.done [#allocation6], 256
    $region17: #{tpu_custom_call.1} parent=1 // pred_fallthru
      _
    %v40 = vld [vmem:[#allocation2] sm:$0xff]
    %v41 = vld [vmem:[#allocation2 + $0x8] sm:$0xff]
    %v42 = vld [vmem:[#allocation5] sm:$0xff]
    %v43 = vld [vmem:[#allocation5 + $0x8] sm:$0xff]
    %vm44 = vcmask 130048
    %v46 = vsel %vm44, %v40, 0
    %v49 = vsel %vm44, %v41, 0
    %51 = vmatprep.subr.mxu0 0.0
    %52 = vmatpush1.msra.mxu0 %v42
    %53 = vmatprep.subr.mxu0 0.0
    %54 = vmatpush1.msra.mxu0 %v43
    %55 = vmatprep.subr.mxu0 0.0
    %56 = vmatpush1.msra.mxu0 0.0
    %57 = vmatprep.subr.mxu0 0.0
    %58 = vmatpush1.msra.mxu0 0.0
    %59 = vmatprep.subr.mxu0 0.0
    %60 = vmatpush1.msra.mxu0 0.0
    %61 = vmatprep.subr.mxu0 0.0
    %62 = vmatpush1.msra.mxu0 0.0
    %63 = vmatprep.subr.mxu0 0.0
    %64 = vmatpush1.msra.mxu0 0.0
    %65 = vmatprep.subr.mxu0 0.0
    %66 = vmatpush1.msra.mxu0 0.0
    %67 = vmatprep.subr.mxu0 0.0
    %68 = vmatpush1.msra.mxu0 0.0
    %69 = vmatprep.subr.mxu0 0.0
    %70 = vmatpush1.msra.mxu0 0.0
    %71 = vmatprep.subr.mxu0 0.0
    %72 = vmatpush1.msra.mxu0 0.0
    %73 = vmatprep.subr.mxu0 0.0
    %74 = vmatpush1.msra.mxu0 0.0
    %75 = vmatprep.subr.mxu0 0.0
    %76 = vmatpush1.msra.mxu0 0.0
    %77 = vmatprep.subr.mxu0 0.0
    %78 = vmatpush1.msra.mxu0 0.0
    %79 = vmatprep.subr.mxu0 0.0
    %80 = vmatpush1.msra.mxu0 0.0
    %81 = vmatprep.subr.mxu0 0.0
    %82 = vmatpush1.msra.mxu0 0.0
    %83 = vmatprep.subr.mxu0 0.0
    %84 = vmatpush1.msra.mxu0 0.0
    %85 = vmatprep.subr.mxu0 0.0
    %86 = vmatpush1.msra.mxu0 0.0
    %87 = vmatprep.subr.mxu0 0.0
    %88 = vmatpush1.msra.mxu0 0.0
    %89 = vmatprep.subr.mxu0 0.0
    %90 = vmatpush1.msra.mxu0 0.0
    %91 = vmatprep.subr.mxu0 0.0
    %92 = vmatpush1.msra.mxu0 0.0
    %93 = vmatprep.subr.mxu0 0.0
    %94 = vmatpush1.msra.mxu0 0.0
    %95 = vmatprep.subr.mxu0 0.0
    %96 = vmatpush1.msra.mxu0 0.0
    %97 = vmatprep.subr.mxu0 0.0
    %98 = vmatpush1.msra.mxu0 0.0
    %99 = vmatprep.subr.mxu0 0.0
    %100 = vmatpush1.msra.mxu0 0.0
    %101 = vmatprep.subr.mxu0 0.0
    %102 = vmatpush1.msra.mxu0 0.0
    %103 = vmatprep.subr.mxu0 0.0
    %104 = vmatpush1.msra.mxu0 0.0
    %105 = vmatprep.subr.mxu0 0.0
    %106 = vmatpush1.msra.mxu0 0.0
    %107 = vmatprep.subr.mxu0 0.0
    %108 = vmatpush1.msra.mxu0 0.0
    %109 = vmatprep.subr.mxu0 0.0
    %110 = vmatpush1.msra.mxu0 0.0
    %111 = vmatprep.subr.mxu0 0.0
    %112 = vmatpush1.msra.mxu0 0.0
    %113 = vmatprep.subr.mxu0 0.0
    %114 = vmatpush1.msra.mxu0 0.0
    %115 = vmatprep.mubr.f32.mxu0 0.0
    %116 = vmatmul.mubr.f32.gmra.mrb[0].mxu0 %v46
    %v117 = vpop.f32.mrb[0].mxu0
    %v118 = vadd.f32 0.0, %v117
    %v119 = vpop.f32.mrb[0].mxu0
    %120 = vmatprep.mubr.f32.mxu0 0.0
    %121 = vmatmul.mubr.f32.gmra.mrb[0].mxu0 %v49
    %v122 = vpop.f32.mrb[0].mxu0
    %v123 = vadd.f32 0.0, %v122
    %v124 = vpop.f32.mrb[0].mxu0
    %125 = vdwg.mxu0
    %126 = vst [vmem:[#allocation7] sm:$0xff] %v118
    %127 = vst [vmem:[#allocation7 + $0x8] sm:$0xff] %v123
    // Predicated region
    $region18: #{tpu_custom_call.1} parent=1 // pred_check
      _
    $region19: #{tpu_custom_call.1} parent=1 // pred_check_branch
      %129 = sbr.rel (0) target = $region21
    $region20: #{tpu_custom_call.1} parent=1 // pred_region
      %s131 = ssub.s32 256, 256
      %132 = vsyncadd [#allocation4], %s131
      %s133 = sshll.u32 [#allocation7], 4
      %s134 = int_to_ptr.vmem [resolvable:$true] %s133
      %139 = dma.vmem_to_hbm [thread:$0]  %s134, 256, %s2, [#allocation4], 128, 128, 8
    $region21: #{tpu_custom_call.1} parent=1 // pred_fallthru
      _
    // Predicated region
    $region22: #{tpu_custom_call.1} parent=1 // pred_check
      _
    $region23: #{tpu_custom_call.1} parent=1 // pred_check_branch
      %141 = sbr.rel (0) target = $region25
    $region24: #{tpu_custom_call.1} parent=1 // pred_region
      %142 = dma.done [#allocation4], 256
    $region25: #{tpu_custom_call.1} parent=1 // pred_fallthru
      _
    %143 = vsyncpa [#allocation3], 1
    %144 = vsyncpa [#allocation6], 1
    %145 = vsyncpa [#allocation4], 1

</llo_original>
